<compile_context>
chip_gen: v6e
topology: v6e:2x2x1
jax: 0.10.0
libtpu: 0.0.40
codegen_flags: <defaults>
</compile_context>

<pallas_src>
import functools

import numpy as np
import jax
import jax.numpy as jnp
from jax.experimental import pallas as pl
from jax.experimental.pallas import tpu as pltpu

IN_FLAT = 24 * 24   # 576  (flattened 24x24 input image)
POOLED = 12 * 12    # 144  (flattened 12x12 pooled image)
H_PAD = 128         # lane-padded hidden / output width

# Row layout of the packed parameter slab (all lane-padded to 128):
W1_ROW = 0                  # rows   0:576 -> fused (pool o fc1) weight [576, h1]
W2_ROW = IN_FLAT            # rows 576:704 -> fc2 weight                [h1, h2]
W3_ROW = W2_ROW + H_PAD     # rows 704:832 -> output weight             [h2, 1]
B1_ROW = W3_ROW + H_PAD     # row      832 -> fc1 bias
B2_ROW = B1_ROW + 1         # row      833 -> fc2 bias
B3_ROW = B2_ROW + 1         # row      834 -> output bias
SLAB_ROWS = 840             # multiple of 8


def _blink_kernel(x_ref, slab_ref, o_ref):
    cd = slab_ref.dtype                          # compute dtype (bf16 or f32)
    x = x_ref[...].astype(cd)                    # [TB, 576] MXU operand

    w1 = slab_ref[W1_ROW:W1_ROW + IN_FLAT, :]    # [576, 128] pool folded in
    w2 = slab_ref[W2_ROW:W2_ROW + H_PAD, :]      # [128, 128]
    w3 = slab_ref[W3_ROW:W3_ROW + H_PAD, :]      # [128, 128]
    b1 = slab_ref[B1_ROW:B1_ROW + 1, :].astype(jnp.float32)   # [1, 128]
    b2 = slab_ref[B2_ROW:B2_ROW + 1, :].astype(jnp.float32)   # [1, 128]
    b3 = slab_ref[B3_ROW:B3_ROW + 1, :].astype(jnp.float32)   # [1, 128]

    # fc1 (with pooling folded in) + sigmoid.  Padded lanes give sigmoid(0)=0.5
    # but the corresponding rows of w2 / w3 are zero, so they contribute 0.
    h1 = jax.nn.sigmoid(
        jnp.dot(x, w1, preferred_element_type=jnp.float32) + b1).astype(cd)
    # fc2 + sigmoid
    h2 = jax.nn.sigmoid(
        jnp.dot(h1, w2, preferred_element_type=jnp.float32) + b2).astype(cd)
    # output layer + sigmoid (lane 0 is the real output; rest is padding).
    out = jax.nn.sigmoid(
        jnp.dot(h2, w3, preferred_element_type=jnp.float32) + b3)

    o_ref[...] = out.astype(o_ref.dtype)


def _pool_matrix_np():
    """Constant [576, 144] matrix implementing AvgPool2d(2,2) on a 24x24 image
    flattened row-major (NCHW order), matching torch's reshape(B, -1)."""
    P = np.zeros((IN_FLAT, POOLED), dtype=np.float32)
    for i in range(12):
        for j in range(12):
            for di in range(2):
                for dj in range(2):
                    P[(2 * i + di) * 24 + (2 * j + dj), i * 12 + j] = 0.25
    return P


_POOL_NP = _pool_matrix_np()


def _round_up(x, m):
    return (x + m - 1) // m * m


def _choose_tiling(B, block_b):
    """Pick (tb, b_pad, num_tiles).

    Guarantees num_tiles >= 2 and a multiple of 2 (so v7x's two TensorCores
    can each take grid steps and the DMA pipeline double-buffers), then sizes
    the tile from the step count to minimize batch zero-padding."""
    num_tiles = max(2, pl.cdiv(B, block_b))
    num_tiles = _round_up(num_tiles, 2)
    tb = _round_up(pl.cdiv(B, num_tiles), 8)
    b_pad = tb * num_tiles
    return tb, b_pad, num_tiles


@functools.partial(jax.jit, static_argnames=("block_b", "compute_dtype"))
def blink_forward(x_nchw, params, *, block_b=2048,
                  compute_dtype=jnp.bfloat16):
    """x_nchw: [B, 1, 24, 24] (f32 or bf16).  Returns [B, 1] float32."""
    w1, b1, w2, b2, w3, b3 = params
    h1 = w1.shape[1]
    h2 = w2.shape[1]
    B = x_nchw.shape[0]

    # Slab layout hard-codes lane-padded hidden widths of 128.
    if h1 > H_PAD or h2 > H_PAD:
        raise ValueError(f"hidden sizes must be <= {H_PAD}, got ({h1}, {h2})")

    # --- fold AvgPool2d into fc1 (both linear => mathematically exact). -----
    # HIGHEST precision: runs once per call on a tiny matmul and keeps the
    # fused weights from drifting (bf16-pass) away from the unfused reference.
    pool = jnp.asarray(_POOL_NP)
    w1_fused = jnp.dot(pool, w1, precision=jax.lax.Precision.HIGHEST)  # [576,h1]

    # --- pack all params, zero-padded to 128 lanes, into one slab. ----------
    slab = jnp.zeros((SLAB_ROWS, H_PAD), jnp.float32)
    slab = slab.at[W1_ROW:W1_ROW + IN_FLAT, 0:h1].set(w1_fused)
    slab = slab.at[W2_ROW:W2_ROW + h1, 0:h2].set(w2)
    slab = slab.at[W3_ROW:W3_ROW + h2, 0:1].set(w3)
    slab = slab.at[B1_ROW, 0:h1].set(b1.reshape(-1))
    slab = slab.at[B2_ROW, 0:h2].set(b2.reshape(-1))
    slab = slab.at[B3_ROW, 0:1].set(b3.reshape(-1))
    slab = slab.astype(compute_dtype)            # bf16 slab: half the DMA/VMEM

    # --- batch tiling: >= 2 grid steps, tile sized to minimize padding. -----
    tb, b_pad, num_tiles = _choose_tiling(B, block_b)
    x_flat = x_nchw.reshape(B, IN_FLAT)          # keep caller's dtype (no cast)
    x_flat = jnp.pad(x_flat, ((0, b_pad - B), (0, 0)))

    out_padded = pl.pallas_call(
        _blink_kernel,
        out_shape=jax.ShapeDtypeStruct((b_pad, H_PAD), compute_dtype),
        grid=(num_tiles,),
        in_specs=[
            pl.BlockSpec((tb, IN_FLAT), lambda i: (i, 0)),        # streamed x
            pl.BlockSpec((SLAB_ROWS, H_PAD), lambda i: (0, 0)),   # resident params
        ],
        out_specs=pl.BlockSpec((tb, H_PAD), lambda i: (i, 0)),    # lane-dense out
        compiler_params=pltpu.CompilerParams(
            dimension_semantics=("parallel",),
            vmem_limit_bytes=48 * 1024 * 1024,
        ),
    )(x_flat, slab)

    # Lane 0 of each row is the real logit; return f32 to match the module.
    return out_padded[:B, :1].astype(jnp.float32)


def init_params(key, hidden_nodes=(5, 5)):
    """PyTorch-style Linear init: U(-1/sqrt(fan_in), +1/sqrt(fan_in)).

    Weights stored as [in, out] (transposed vs torch) so the kernel does
    x @ W directly; biases stored as [1, out]."""
    h1, h2 = hidden_nodes
    dims = [(POOLED, h1), (h1, h2), (h2, 1)]
    params = []
    for fan_in, fan_out in dims:
        key, kw, kb = jax.random.split(key, 3)
        bound = 1.0 / np.sqrt(fan_in)
        w = jax.random.uniform(kw, (fan_in, fan_out), jnp.float32,
                               minval=-bound, maxval=bound)
        b = jax.random.uniform(kb, (1, fan_out), jnp.float32,
                               minval=-bound, maxval=bound)
        params.extend([w, b])
    return tuple(params)


def blink_reference(x_nchw, params):
    """Plain-JAX reference mirroring the PyTorch forward (unfused, f32)."""
    w1, b1, w2, b2, w3, b3 = params
    B = x_nchw.shape[0]
    x = x_nchw.reshape(B, 1, 12, 2, 12, 2).mean(axis=(3, 5))   # AvgPool2d(2,2)
    x = x.reshape(B, -1)
    x = jax.nn.sigmoid(x @ w1 + b1)
    x = jax.nn.sigmoid(x @ w2 + b2)
    x = jax.nn.sigmoid(x @ w3 + b3)
    return x


if __name__ == "__main__":
    key = jax.random.PRNGKey(0)
    key, kx = jax.random.split(key)

    params = init_params(key, hidden_nodes=(5, 5))

    # Small check (B=2).  Even here the grid is (2,) so the parallel batch
    # axis / DMA pipeline is exercised.
    B = 2
    x = jax.random.normal(kx, (B, 1, 24, 24), dtype=jnp.float32)   # NCHW
    ref = blink_reference(x, params)

    # Default fast path: bf16 MXU operands + f32 accumulation, bf16 writeback.
    out_bf16 = jax.block_until_ready(blink_forward(x, params))
    assert out_bf16.shape == (B, 1), out_bf16.shape
    np.testing.assert_allclose(np.asarray(out_bf16), np.asarray(ref),
                               rtol=2e-2, atol=2e-2)

    # Full-f32 path matches the unfused reference tightly.
    out_f32 = jax.block_until_ready(
        blink_forward(x, params, compute_dtype=jnp.float32))
    assert out_f32.shape == (B, 1), out_f32.shape
    np.testing.assert_allclose(np.asarray(out_f32), np.asarray(ref),
                               rtol=1e-4, atol=1e-4)

    # Multi-tile check (B=24, block_b=8 -> grid=(4,), tb=8) exercising the
    # batch pipeline and the padding-minimizing tile derivation.
    B2 = 24
    x2 = jax.random.normal(jax.random.PRNGKey(1), (B2, 1, 24, 24),
                           dtype=jnp.float32)
    ref2 = blink_reference(x2, params)
    out2 = jax.block_until_ready(
        blink_forward(x2, params, block_b=8, compute_dtype=jnp.float32))
    assert out2.shape == (B2, 1), out2.shape
    np.testing.assert_allclose(np.asarray(out2), np.asarray(ref2),
                               rtol=1e-4, atol=1e-4)

    out2_bf16 = jax.block_until_ready(blink_forward(x2, params, block_b=8))
    np.testing.assert_allclose(np.asarray(out2_bf16), np.asarray(ref2),
                               rtol=2e-2, atol=2e-2)

    print("KERNEL_OK")
</pallas_src>

<mosaic_0001>
module attributes {stable_mosaic.version = 11 : i64} {
  func.func @_blink_kernel(%arg0: i32, %arg1: memref<8x576xf32, #tpu.memory_space<vmem>>, %arg2: memref<840x128xbf16, #tpu.memory_space<vmem>>, %arg3: memref<8x128xbf16, #tpu.memory_space<vmem>>) attributes {dimension_semantics = [#tpu.dimension_semantics<parallel>], iteration_bounds = array<i64: 2>, scalar_prefetch = 0 : i64, scratch_operands = 0 : i64, tpu.core_type = #tpu.core_type<tc>, window_params = [{transform_indices = @transform_0, window_bounds = array<i64: 8, 576>}, {pipeline_mode = #tpu.pipeline_mode<synchronous>, transform_indices = @transform_1, window_bounds = array<i64: 840, 128>}, {transform_indices = @transform_2, window_bounds = array<i64: 8, 128>}]} {
    %c0 = arith.constant 0 : index
    %c0_0 = arith.constant 0 : index
    %0 = vector.load %arg1[%c0, %c0_0] : memref<8x576xf32, #tpu.memory_space<vmem>>, vector<8x576xf32>
    %1 = arith.truncf %0 : vector<8x576xf32> to vector<8x576xbf16>
    %c0_1 = arith.constant 0 : index
    %c0_2 = arith.constant 0 : index
    %2 = vector.load %arg2[%c0_1, %c0_2] : memref<840x128xbf16, #tpu.memory_space<vmem>>, vector<576x128xbf16>
    %c576 = arith.constant 576 : index
    %c0_3 = arith.constant 0 : index
    %3 = vector.load %arg2[%c576, %c0_3] : memref<840x128xbf16, #tpu.memory_space<vmem>>, vector<128x128xbf16>
    %c704 = arith.constant 704 : index
    %c0_4 = arith.constant 0 : index
    %4 = vector.load %arg2[%c704, %c0_4] : memref<840x128xbf16, #tpu.memory_space<vmem>>, vector<128x128xbf16>
    %c832 = arith.constant 832 : index
    %c0_5 = arith.constant 0 : index
    %5 = vector.load %arg2[%c832, %c0_5] : memref<840x128xbf16, #tpu.memory_space<vmem>>, vector<1x128xbf16>
    %6 = arith.extf %5 : vector<1x128xbf16> to vector<1x128xf32>
    %c833 = arith.constant 833 : index
    %c0_6 = arith.constant 0 : index
    %7 = vector.load %arg2[%c833, %c0_6] : memref<840x128xbf16, #tpu.memory_space<vmem>>, vector<1x128xbf16>
    %8 = arith.extf %7 : vector<1x128xbf16> to vector<1x128xf32>
    %c834 = arith.constant 834 : index
    %c0_7 = arith.constant 0 : index
    %9 = vector.load %arg2[%c834, %c0_7] : memref<840x128xbf16, #tpu.memory_space<vmem>>, vector<1x128xbf16>
    %10 = arith.extf %9 : vector<1x128xbf16> to vector<1x128xf32>
    %cst = arith.constant dense<0.000000e+00> : vector<8x128xf32>
    %11 = tpu.matmul %1, %2, %cst {dimension_numbers = #tpu.dot_dimension_numbers<[1], [0], [0], [1], [0, 0, 1, 1], [], []>} : vector<8x576xbf16>, vector<576x128xbf16>, vector<8x128xf32> -> vector<8x128xf32>
    %12 = vector.broadcast %6 : vector<1x128xf32> to vector<8x128xf32>
    %13 = arith.addf %11, %12 : vector<8x128xf32>
    %14 = arith.negf %13 : vector<8x128xf32>
    %15 = math.exp %14 : vector<8x128xf32>
    %cst_8 = arith.constant 1.000000e+00 : f32
    %16 = vector.broadcast %cst_8 : f32 to vector<8x128xf32>
    %17 = arith.addf %16, %15 : vector<8x128xf32>
    %18 = arith.divf %16, %17 : vector<8x128xf32>
    %19 = arith.truncf %18 : vector<8x128xf32> to vector<8x128xbf16>
    %cst_9 = arith.constant dense<0.000000e+00> : vector<8x128xf32>
    %20 = tpu.matmul %19, %3, %cst_9 {dimension_numbers = #tpu.dot_dimension_numbers<[1], [0], [0], [1], [0, 0, 1, 1], [], []>} : vector<8x128xbf16>, vector<128x128xbf16>, vector<8x128xf32> -> vector<8x128xf32>
    %21 = vector.broadcast %8 : vector<1x128xf32> to vector<8x128xf32>
    %22 = arith.addf %20, %21 : vector<8x128xf32>
    %23 = arith.negf %22 : vector<8x128xf32>
    %24 = math.exp %23 : vector<8x128xf32>
    %cst_10 = arith.constant 1.000000e+00 : f32
    %25 = vector.broadcast %cst_10 : f32 to vector<8x128xf32>
    %26 = arith.addf %25, %24 : vector<8x128xf32>
    %27 = arith.divf %25, %26 : vector<8x128xf32>
    %28 = arith.truncf %27 : vector<8x128xf32> to vector<8x128xbf16>
    %cst_11 = arith.constant dense<0.000000e+00> : vector<8x128xf32>
    %29 = tpu.matmul %28, %4, %cst_11 {dimension_numbers = #tpu.dot_dimension_numbers<[1], [0], [0], [1], [0, 0, 1, 1], [], []>} : vector<8x128xbf16>, vector<128x128xbf16>, vector<8x128xf32> -> vector<8x128xf32>
    %30 = vector.broadcast %10 : vector<1x128xf32> to vector<8x128xf32>
    %31 = arith.addf %29, %30 : vector<8x128xf32>
    %32 = arith.negf %31 : vector<8x128xf32>
    %33 = math.exp %32 : vector<8x128xf32>
    %cst_12 = arith.constant 1.000000e+00 : f32
    %34 = vector.broadcast %cst_12 : f32 to vector<8x128xf32>
    %35 = arith.addf %34, %33 : vector<8x128xf32>
    %36 = arith.divf %34, %35 : vector<8x128xf32>
    %37 = arith.truncf %36 : vector<8x128xf32> to vector<8x128xbf16>
    %c0_13 = arith.constant 0 : index
    %c0_14 = arith.constant 0 : index
    %38 = vector.load %arg3[%c0_13, %c0_14] : memref<8x128xbf16, #tpu.memory_space<vmem>>, vector<8x128xbf16>
    tpu.vector_store %arg3[%c0_13, %c0_14], %37 {strides = array<i32>} : memref<8x128xbf16, #tpu.memory_space<vmem>>, vector<8x128xbf16>,
    return
  }
  func.func @transform_0(%arg0: i32) -> (i32, i32) {
    %c0_i32 = arith.constant 0 : i32
    %c0_i32_0 = arith.constant 0 : i32
    return %arg0, %c0_i32 : i32, i32
  }
  func.func @transform_1(%arg0: i32) -> (i32, i32) {
    %c0_i32 = arith.constant 0 : i32
    %c0_i32_0 = arith.constant 0 : i32
    %c0_i32_1 = arith.constant 0 : i32
    return %c0_i32, %c0_i32_0 : i32, i32
  }
  func.func @transform_2(%arg0: i32) -> (i32, i32) {
    %c0_i32 = arith.constant 0 : i32
    %c0_i32_0 = arith.constant 0 : i32
    return %arg0, %c0_i32 : i32, i32
  }
}

</mosaic_0001>

<llo_original>
// kernel: blink_forward.1
$region0: #{blink_forward.1}
  #allocation0 [shape = 'u32[]', space=smem, size = 0x4, offset = 0x4, fixed_abs, tag = 'smem constant byte address 0x4 - core index']
  #allocation1 [shape = 'u32[144,128]{1,0:T(1,128)}', space=vmem, size = 0x12000, scoped, tag = 'internal scratch']
  %s0 = inlined_call_operand.vmem [shape: f32[16,576], index: 0, kind: input, shape index: {}]
  %s1 = inlined_call_operand.vmem [shape: bf16[840,128], index: 1, kind: input, shape index: {}]
  %s2 = inlined_call_operand.vmem [shape: bf16[16,128], index: 2, kind: output, shape index: {}]
  %s3 = sld [smem:[#allocation0]]
  $region41: #{blink_forward.1} parent=0
    _
  %s5 = ssub.s32 1, %s3
  %s6 = scalar_select 0, %s5, %s3
  loop: start=0, step=1, limit=4
  $region2: #{blink_forward.1} parent=0 // loop_pre_header
    _
  $region3: #{blink_forward.1} parent=0 // loop_header
    %s8 = sphi 0, %s12
    %p9 = scmp.ge.s32.totalorder %s8, 4
    %s18 = sphi 0, %s20
    %s21 = sphi 0, %s18
    %s22 = sphi 0, %s21
    %s38 = sphi 0, %s22
    %s42 = sphi 0, %s42
    %s44 = sphi 0, %s42
    %s45 = sphi 0, %s44
    %s59 = sphi 0, %s45
    %s65 = sphi 0, %s67
    %s68 = sphi 0, %s65
    %s69 = sphi 0, %s68
    %s85 = sphi 0, %s69
  $region4: #{blink_forward.1} parent=0 // loop_header_branch
    %11 = sbr.rel (%p9) target = $region8
  $region5: #{blink_forward.1} parent=0 // loop_body
    %s13 = ssub.s32 %s8, 1
    %s14 = ssub.s32 %s8, 2
    %s15 = sadd.s32 %s8, 1
    %s16 = ssub.s32 %s8, %s15
    %p17 = scmp.eq.s32.totalorder %s16, 0
    %s19 = sadd.s32 %s18, 1
    %s20 = scalar_select %p17, %s18, %s19
    %p23 = pneg %p17
    %p24 = scmp.eq.s32.totalorder %s8, 1
    %p25 = por %p23, %p24
    %p26 = scmp.ne.s32.totalorder %s18, %s21
    %p27 = scmp.eq.s32.totalorder %s8, 0
    %p28 = por %p26, %p27
    %p29 = scmp.ne.s32.totalorder %s18, %s21
    %p30 = scmp.eq.s32.totalorder %s13, 1
    %p31 = por %p29, %p30
    %p32 = scmp.ne.s32.totalorder %s21, %s22
    %p33 = scmp.eq.s32.totalorder %s13, 0
    %p34 = por %p32, %p33
    %p35 = scmp.ne.s32.totalorder %s21, %s22
    %p36 = scmp.eq.s32.totalorder %s14, 1
    %p37 = por %p35, %p36
    %p39 = scmp.ne.s32.totalorder %s22, %s38
    %p40 = scmp.eq.s32.totalorder %s14, 0
    %p41 = por %p39, %p40
    %s43 = sadd.s32 %s42, 1
    %p46 = scmp.eq.s32.totalorder %s8, 1
    %p47 = scmp.ne.s32.totalorder %s42, %s44
    %p48 = scmp.eq.s32.totalorder %s8, 0
    %p49 = por %p47, %p48
    %p50 = scmp.ne.s32.totalorder %s42, %s44
    %p51 = scmp.eq.s32.totalorder %s13, 1
    %p52 = por %p50, %p51
    %p53 = scmp.ne.s32.totalorder %s44, %s45
    %p54 = scmp.eq.s32.totalorder %s13, 0
    %p55 = por %p53, %p54
    %p56 = scmp.ne.s32.totalorder %s44, %s45
    %p57 = scmp.eq.s32.totalorder %s14, 1
    %p58 = por %p56, %p57
    %p60 = scmp.ne.s32.totalorder %s45, %s59
    %p61 = scmp.eq.s32.totalorder %s14, 0
    %p62 = por %p60, %p61
    %s63 = ssub.s32 %s8, %s15
    %p64 = scmp.eq.s32.totalorder %s63, 0
    %s66 = sadd.s32 %s65, 1
    %s67 = scalar_select %p64, %s65, %s66
    %p70 = pneg %p64
    %p71 = scmp.eq.s32.totalorder %s8, 1
    %p72 = por %p70, %p71
    %p73 = scmp.ne.s32.totalorder %s65, %s68
    %p74 = scmp.eq.s32.totalorder %s8, 0
    %p75 = por %p73, %p74
    %p76 = scmp.ne.s32.totalorder %s65, %s68
    %p77 = scmp.eq.s32.totalorder %s13, 1
    %p78 = por %p76, %p77
    %p79 = scmp.ne.s32.totalorder %s68, %s69
    %p80 = scmp.eq.s32.totalorder %s13, 0
    %p81 = por %p79, %p80
    %p82 = scmp.ne.s32.totalorder %s68, %s69
    %p83 = scmp.eq.s32.totalorder %s14, 1
    %p84 = por %p82, %p83
    %p86 = scmp.ne.s32.totalorder %s69, %s85
    %p87 = scmp.eq.s32.totalorder %s14, 0
    %p88 = por %p86, %p87
    %p89 = scmp.le.s32.totalorder 1, %s8
    %p90 = scmp.lt.s32.totalorder %s8, 3
    %p91 = pnand %p89, %p90
    %p92 = pneg %p91
    // Predicated region
    $region9: #{blink_forward.1} parent=5 // pred_check
      _
    $region10: #{blink_forward.1} parent=5 // pred_check_branch
      %94 = sbr.rel (%p91) target = $region12
    $region11: #{blink_forward.1} parent=5 // pred_region
      %s95 = ssub.s32 %s8, 1
      // Predicated region
      $region13: #{blink_forward.1} parent=11 // pred_check
        %p96 = pneg %p55
      $region14: #{blink_forward.1} parent=11 // pred_check_branch
        %98 = sbr.rel (%p96) target = $region16
      $region15: #{blink_forward.1} parent=11 // pred_region
        _
      $region16: #{blink_forward.1} parent=11 // pred_fallthru
        _
    $region12: #{blink_forward.1} parent=5 // pred_fallthru
      _
    %p99 = scmp.lt.s32.totalorder %s8, 2
    // Predicated region
    $region17: #{blink_forward.1} parent=5 // pred_check
      %p100 = pneg %p99
    $region18: #{blink_forward.1} parent=5 // pred_check_branch
      %102 = sbr.rel (%p100) target = $region20
    $region19: #{blink_forward.1} parent=5 // pred_region
      // Predicated region
      $region21: #{blink_forward.1} parent=19 // pred_check
        %p103 = pneg %p28
      $region22: #{blink_forward.1} parent=19 // pred_check_branch
        %105 = sbr.rel (%p103) target = $region24
      $region23: #{blink_forward.1} parent=19 // pred_region
        %p106 = scmp.lt.s32.totalorder %s8, 1
        %s107 = scalar_select %p106, %s8, 1
        %s108 = smul.addr %s107, 5
        %s109 = smul.addr %s108, 8
        %s110 = scalar_lea.vmem %s0, %s109
      $region24: #{blink_forward.1} parent=19 // pred_fallthru
        _
    $region20: #{blink_forward.1} parent=5 // pred_fallthru
      _
    %p111 = scmp.le.s32.totalorder 1, %s8
    %p112 = scmp.lt.s32.totalorder %s8, 3
    %p113 = pnand %p111, %p112
    %p114 = pneg %p113
    // Predicated region
    $region25: #{blink_forward.1} parent=5 // pred_check
      _
    $region26: #{blink_forward.1} parent=5 // pred_check_branch
      %116 = sbr.rel (%p113) target = $region28
    $region27: #{blink_forward.1} parent=5 // pred_region
      %s117 = ssub.s32 %s8, 1
      %p118 = scmp.lt.s32.totalorder %s13, 1
      %s119 = scalar_select %p118, %s13, 1
      %s120 = smul.addr %s119, 5
      %s121 = smul.addr %s120, 8
      %s122 = scalar_lea.vmem %s0, %s121
      %p123 = pneg %p34
      %p124 = pneg %p31
      %p125 = pneg %p55
      %p126 = pneg %p52
      %p127 = pneg %p81
      %p128 = pneg %p78
      %p129 = scmp.lt.s32.totalorder %s13, 1
      %s130 = scalar_select %p129, %s13, 1
      %s131 = smul.addr %s130, 4
      %s132 = scalar_lea.vmem %s2, %s131
      %p133 = scmp.lt.s32.totalorder %s13, 1
      %s134 = scalar_select %p133, %s13, 1
      %s135 = smul.addr %s134, 5
      %s136 = smul.addr %s135, 8
      %s137 = scalar_lea.vmem %s0, %s136
      %p138 = scmp.lt.s32.totalorder %s13, 1
      %s139 = scalar_select %p138, %s13, 1
      %s140 = smul.addr %s139, 4
      %s141 = scalar_lea.vmem %s2, %s140
      %v143 = vld [vmem:[%s137] sm:$0xff]
      %v144 = vld [vmem:[%s137 + $0x8] sm:$0xff]
      %v145 = vld [vmem:[%s137 + $0x10] sm:$0xff]
      %v146 = vld [vmem:[%s137 + $0x18] sm:$0xff]
      %v147 = vld [vmem:[%s137 + $0x20] sm:$0xff]
      %v148 = vpack.c.bf16 %v143, %v143
      %v149 = vpack.c.bf16 %v144, %v144
      %v150 = vpack.c.bf16 %v145, %v145
      %v151 = vpack.c.bf16 %v146, %v146
      %v152 = vpack.c.bf16 %v147, %v147
      %v153 = vld [vmem:[%s1] sm:$0xf]
      %v154 = vld [vmem:[%s1 + $0x4] sm:$0xf]
      %v155 = vld [vmem:[%s1 + $0x8] sm:$0xf]
      %v156 = vld [vmem:[%s1 + $0xc] sm:$0xf]
      %v157 = vld [vmem:[%s1 + $0x10] sm:$0xf]
      %v158 = vld [vmem:[%s1 + $0x14] sm:$0xf]
      %v159 = vld [vmem:[%s1 + $0x18] sm:$0xf]
      %v160 = vld [vmem:[%s1 + $0x1c] sm:$0xf]
      %v161 = vld [vmem:[%s1 + $0x20] sm:$0xf]
      %v162 = vld [vmem:[%s1 + $0x24] sm:$0xf]
      %v163 = vld [vmem:[%s1 + $0x28] sm:$0xf]
      %v164 = vld [vmem:[%s1 + $0x2c] sm:$0xf]
      %v165 = vld [vmem:[%s1 + $0x30] sm:$0xf]
      %v166 = vld [vmem:[%s1 + $0x34] sm:$0xf]
      %v167 = vld [vmem:[%s1 + $0x38] sm:$0xf]
      %v168 = vld [vmem:[%s1 + $0x3c] sm:$0xf]
      %v169 = vld [vmem:[%s1 + $0x40] sm:$0xf]
      %v170 = vld [vmem:[%s1 + $0x44] sm:$0xf]
      %v171 = vld [vmem:[%s1 + $0x48] sm:$0xf]
      %v172 = vld [vmem:[%s1 + $0x4c] sm:$0xf]
      %v173 = vld [vmem:[%s1 + $0x50] sm:$0xf]
      %v174 = vld [vmem:[%s1 + $0x54] sm:$0xf]
      %v175 = vld [vmem:[%s1 + $0x58] sm:$0xf]
      %v176 = vld [vmem:[%s1 + $0x5c] sm:$0xf]
      %v177 = vld [vmem:[%s1 + $0x60] sm:$0xf]
      %v178 = vld [vmem:[%s1 + $0x64] sm:$0xf]
      %v179 = vld [vmem:[%s1 + $0x68] sm:$0xf]
      %v180 = vld [vmem:[%s1 + $0x6c] sm:$0xf]
      %v181 = vld [vmem:[%s1 + $0x70] sm:$0xf]
      %v182 = vld [vmem:[%s1 + $0x74] sm:$0xf]
      %v183 = vld [vmem:[%s1 + $0x78] sm:$0xf]
      %v184 = vld [vmem:[%s1 + $0x7c] sm:$0xf]
      %v185 = vld [vmem:[%s1 + $0x80] sm:$0xf]
      %v186 = vld [vmem:[%s1 + $0x84] sm:$0xf]
      %v187 = vld [vmem:[%s1 + $0x88] sm:$0xf]
      %v188 = vld [vmem:[%s1 + $0x8c] sm:$0xf]
      %v189 = vld [vmem:[%s1 + $0x90] sm:$0xf]
      %v190 = vld [vmem:[%s1 + $0x94] sm:$0xf]
      %v191 = vld [vmem:[%s1 + $0x98] sm:$0xf]
      %v192 = vld [vmem:[%s1 + $0x9c] sm:$0xf]
      %v193 = vld [vmem:[%s1 + $0xa0] sm:$0xf]
      %v194 = vld [vmem:[%s1 + $0xa4] sm:$0xf]
      %v195 = vld [vmem:[%s1 + $0xa8] sm:$0xf]
      %v196 = vld [vmem:[%s1 + $0xac] sm:$0xf]
      %v197 = vld [vmem:[%s1 + $0xb0] sm:$0xf]
      %v198 = vld [vmem:[%s1 + $0xb4] sm:$0xf]
      %v199 = vld [vmem:[%s1 + $0xb8] sm:$0xf]
      %v200 = vld [vmem:[%s1 + $0xbc] sm:$0xf]
      %v201 = vld [vmem:[%s1 + $0xc0] sm:$0xf]
      %v202 = vld [vmem:[%s1 + $0xc4] sm:$0xf]
      %v203 = vld [vmem:[%s1 + $0xc8] sm:$0xf]
      %v204 = vld [vmem:[%s1 + $0xcc] sm:$0xf]
      %v205 = vld [vmem:[%s1 + $0xd0] sm:$0xf]
      %v206 = vld [vmem:[%s1 + $0xd4] sm:$0xf]
      %v207 = vld [vmem:[%s1 + $0xd8] sm:$0xf]
      %v208 = vld [vmem:[%s1 + $0xdc] sm:$0xf]
      %v209 = vld [vmem:[%s1 + $0xe0] sm:$0xf]
      %v210 = vld [vmem:[%s1 + $0xe4] sm:$0xf]
      %v211 = vld [vmem:[%s1 + $0xe8] sm:$0xf]
      %v212 = vld [vmem:[%s1 + $0xec] sm:$0xf]
      %v213 = vld [vmem:[%s1 + $0xf0] sm:$0xf]
      %v214 = vld [vmem:[%s1 + $0xf4] sm:$0xf]
      %v215 = vld [vmem:[%s1 + $0xf8] sm:$0xf]
      %v216 = vld [vmem:[%s1 + $0xfc] sm:$0xf]
      %v217 = vld [vmem:[%s1 + $0x100] sm:$0xf]
      %v218 = vld [vmem:[%s1 + $0x104] sm:$0xf]
      %v219 = vld [vmem:[%s1 + $0x108] sm:$0xf]
      %v220 = vld [vmem:[%s1 + $0x10c] sm:$0xf]
      %v221 = vld [vmem:[%s1 + $0x110] sm:$0xf]
      %v222 = vld [vmem:[%s1 + $0x114] sm:$0xf]
      %v223 = vld [vmem:[%s1 + $0x118] sm:$0xf]
      %v224 = vld [vmem:[%s1 + $0x11c] sm:$0xf]
      %v225 = vld [vmem:[%s1 + $0x120] sm:$0xf]
      %v226 = vld [vmem:[%s1 + $0x124] sm:$0xf]
      %v227 = vld [vmem:[%s1 + $0x128] sm:$0xf]
      %v228 = vld [vmem:[%s1 + $0x12c] sm:$0xf]
      %v229 = vld [vmem:[%s1 + $0x130] sm:$0xf]
      %v230 = vld [vmem:[%s1 + $0x134] sm:$0xf]
      %v231 = vld [vmem:[%s1 + $0x138] sm:$0xf]
      %v232 = vld [vmem:[%s1 + $0x13c] sm:$0xf]
      %v233 = vld [vmem:[%s1 + $0x140] sm:$0xf]
      %v234 = vld [vmem:[%s1 + $0x144] sm:$0xf]
      %v235 = vld [vmem:[%s1 + $0x148] sm:$0xf]
      %v236 = vld [vmem:[%s1 + $0x14c] sm:$0xf]
      %v237 = vld [vmem:[%s1 + $0x150] sm:$0xf]
      %v238 = vld [vmem:[%s1 + $0x154] sm:$0xf]
      %v239 = vld [vmem:[%s1 + $0x158] sm:$0xf]
      %v240 = vld [vmem:[%s1 + $0x15c] sm:$0xf]
      %v241 = vld [vmem:[%s1 + $0x160] sm:$0xf]
      %v242 = vld [vmem:[%s1 + $0x164] sm:$0xf]
      %v243 = vld [vmem:[%s1 + $0x168] sm:$0xf]
      %v244 = vld [vmem:[%s1 + $0x16c] sm:$0xf]
      %v245 = vld [vmem:[%s1 + $0x170] sm:$0xf]
      %v246 = vld [vmem:[%s1 + $0x174] sm:$0xf]
      %v247 = vld [vmem:[%s1 + $0x178] sm:$0xf]
      %v248 = vld [vmem:[%s1 + $0x17c] sm:$0xf]
      %v249 = vld [vmem:[%s1 + $0x180] sm:$0xf]
      %v250 = vld [vmem:[%s1 + $0x184] sm:$0xf]
      %v251 = vld [vmem:[%s1 + $0x188] sm:$0xf]
      %v252 = vld [vmem:[%s1 + $0x18c] sm:$0xf]
      %v253 = vld [vmem:[%s1 + $0x190] sm:$0xf]
      %v254 = vld [vmem:[%s1 + $0x194] sm:$0xf]
      %v255 = vld [vmem:[%s1 + $0x198] sm:$0xf]
      %v256 = vld [vmem:[%s1 + $0x19c] sm:$0xf]
      %v257 = vld [vmem:[%s1 + $0x1a0] sm:$0x1]
      %v258 = vunpack.c.l.bf16 %v257
      %v259 = vld [vmem:[%s1 + $0x1a0] sm:$0x2]
      %v260 = vunpack.c.l.bf16 %v259
      %v261 = vlaneseq
      %v262 = vshrl.u32 %v261, 7
      %v263 = vsub.s32 0, %v262
      %v264 = vrot.slane %v258, %v263
      %v337 = vunpack.c.l.b16 %v153
      %v338 = vunpack.c.l.b16 %v154
      %v339 = vunpack.c.l.b16 %v155
      %v340 = vunpack.c.l.b16 %v156
      %v341 = vunpack.c.l.b16 %v157
      %v342 = vunpack.c.l.b16 %v158
      %v343 = vunpack.c.l.b16 %v159
      %v344 = vunpack.c.l.b16 %v160
      %v345 = vunpack.c.l.b16 %v161
      %v346 = vunpack.c.l.b16 %v162
      %v347 = vunpack.c.l.b16 %v163
      %v348 = vunpack.c.l.b16 %v164
      %v349 = vunpack.c.l.b16 %v165
      %v350 = vunpack.c.l.b16 %v166
      %v351 = vunpack.c.l.b16 %v167
      %v352 = vunpack.c.l.b16 %v168
      %v353 = vunpack.c.l.b16 %v169
      %v354 = vunpack.c.l.b16 %v170
      %v355 = vunpack.c.l.b16 %v171
      %v356 = vunpack.c.l.b16 %v172
      %v357 = vunpack.c.l.b16 %v173
      %v358 = vunpack.c.l.b16 %v174
      %v359 = vunpack.c.l.b16 %v175
      %v360 = vunpack.c.l.b16 %v176
      %v361 = vunpack.c.l.b16 %v177
      %v362 = vunpack.c.l.b16 %v178
      %v363 = vunpack.c.l.b16 %v179
      %v364 = vunpack.c.l.b16 %v180
      %v365 = vunpack.c.l.b16 %v181
      %v366 = vunpack.c.l.b16 %v182
      %v367 = vunpack.c.l.b16 %v183
      %v368 = vunpack.c.l.b16 %v184
      %v369 = vunpack.c.l.b16 %v185
      %v370 = vunpack.c.l.b16 %v186
      %v371 = vunpack.c.l.b16 %v187
      %v372 = vunpack.c.l.b16 %v188
      %v373 = vunpack.c.l.b16 %v189
      %v374 = vunpack.c.l.b16 %v190
      %v375 = vunpack.c.l.b16 %v191
      %v376 = vunpack.c.l.b16 %v192
      %v377 = vunpack.c.l.b16 %v193
      %v378 = vunpack.c.l.b16 %v194
      %v379 = vunpack.c.l.b16 %v195
      %v380 = vunpack.c.l.b16 %v196
      %v381 = vunpack.c.l.b16 %v197
      %v382 = vunpack.c.l.b16 %v198
      %v383 = vunpack.c.l.b16 %v199
      %v384 = vunpack.c.l.b16 %v200
      %v385 = vunpack.c.l.b16 %v201
      %v386 = vunpack.c.l.b16 %v202
      %v387 = vunpack.c.l.b16 %v203
      %v388 = vunpack.c.l.b16 %v204
      %v389 = vunpack.c.l.b16 %v205
      %v390 = vunpack.c.l.b16 %v206
      %v391 = vunpack.c.l.b16 %v207
      %v392 = vunpack.c.l.b16 %v208
      %v393 = vunpack.c.l.b16 %v209
      %v394 = vunpack.c.l.b16 %v210
      %v395 = vunpack.c.l.b16 %v211
      %v396 = vunpack.c.l.b16 %v212
      %v397 = vunpack.c.l.b16 %v213
      %v398 = vunpack.c.l.b16 %v214
      %v399 = vunpack.c.l.b16 %v215
      %v400 = vunpack.c.l.b16 %v216
      %v401 = vunpack.c.l.b16 %v217
      %v402 = vunpack.c.l.b16 %v218
      %v403 = vunpack.c.l.b16 %v219
      %v404 = vunpack.c.l.b16 %v220
      %v405 = vunpack.c.l.b16 %v221
      %v406 = vunpack.c.l.b16 %v222
      %v407 = vunpack.c.l.b16 %v223
      %v408 = vunpack.c.l.b16 %v224
      %v409 = vpack.c.b16 %v338, %v337
      %v410 = vpack.c.b16 %v340, %v339
      %v411 = vpack.c.b16 %v342, %v341
      %v412 = vpack.c.b16 %v344, %v343
      %v413 = vpack.c.b16 %v346, %v345
      %v414 = vpack.c.b16 %v348, %v347
      %v415 = vpack.c.b16 %v350, %v349
      %v416 = vpack.c.b16 %v352, %v351
      %v417 = vpack.c.b16 %v354, %v353
      %v418 = vpack.c.b16 %v356, %v355
      %v419 = vpack.c.b16 %v358, %v357
      %v420 = vpack.c.b16 %v360, %v359
      %v421 = vpack.c.b16 %v362, %v361
      %v422 = vpack.c.b16 %v364, %v363
      %v423 = vpack.c.b16 %v366, %v365
      %v424 = vpack.c.b16 %v368, %v367
      %v425 = vpack.c.b16 %v370, %v369
      %v426 = vpack.c.b16 %v372, %v371
      %v427 = vpack.c.b16 %v374, %v373
      %v428 = vpack.c.b16 %v376, %v375
      %v429 = vpack.c.b16 %v378, %v377
      %v430 = vpack.c.b16 %v380, %v379
      %v431 = vpack.c.b16 %v382, %v381
      %v432 = vpack.c.b16 %v384, %v383
      %v433 = vpack.c.b16 %v386, %v385
      %v434 = vpack.c.b16 %v388, %v387
      %v435 = vpack.c.b16 %v390, %v389
      %v436 = vpack.c.b16 %v392, %v391
      %v437 = vpack.c.b16 %v394, %v393
      %v438 = vpack.c.b16 %v396, %v395
      %v439 = vpack.c.b16 %v398, %v397
      %v440 = vpack.c.b16 %v400, %v399
      %v441 = vpack.c.b16 %v402, %v401
      %v442 = vpack.c.b16 %v404, %v403
      %v443 = vpack.c.b16 %v406, %v405
      %v444 = vpack.c.b16 %v408, %v407
      %vm481 = vcmask 523264
      %v483 = vsel %vm481, %v152, 0
      %485 = vmatprep.subr.bf16.mxu0 0
      %486 = vmatpush1.bf16.msra.mxu0 %v416
      %487 = vmatprep.subr.bf16.mxu0 0
      %488 = vmatpush1.bf16.msra.mxu0 %v415
      %489 = vmatprep.subr.bf16.mxu0 0
      %490 = vmatpush1.bf16.msra.mxu0 %v414
      %491 = vmatprep.subr.bf16.mxu0 0
      %492 = vmatpush1.bf16.msra.mxu0 %v413
      %493 = vmatprep.subr.bf16.mxu0 0
      %494 = vmatpush1.bf16.msra.mxu0 %v412
      %495 = vmatprep.subr.bf16.mxu0 0
      %496 = vmatpush1.bf16.msra.mxu0 %v411
      %497 = vmatprep.subr.bf16.mxu0 0
      %498 = vmatpush1.bf16.msra.mxu0 %v410
      %499 = vmatprep.subr.bf16.mxu0 0
      %500 = vmatpush1.bf16.msra.mxu0 %v409
      %501 = vmatprep.subr.bf16.mxu0 0
      %502 = vmatpush2.bf16.msra.mxu0 %v424
      %503 = vmatprep.subr.bf16.mxu0 0
      %504 = vmatpush2.bf16.msra.mxu0 %v423
      %505 = vmatprep.subr.bf16.mxu0 0
      %506 = vmatpush2.bf16.msra.mxu0 %v422
      %507 = vmatprep.subr.bf16.mxu0 0
      %508 = vmatpush2.bf16.msra.mxu0 %v421
      %509 = vmatprep.subr.bf16.mxu0 0
      %510 = vmatpush2.bf16.msra.mxu0 %v420
      %511 = vmatprep.subr.bf16.mxu0 0
      %512 = vmatpush2.bf16.msra.mxu0 %v419
      %513 = vmatprep.subr.bf16.mxu0 0
      %514 = vmatpush2.bf16.msra.mxu0 %v418
      %515 = vmatprep.subr.bf16.mxu0 0
      %516 = vmatpush2.bf16.msra.mxu0 %v417
      %517 = vmatprep.mubr.bf16.mxu0 %v149
      %518 = vmatmul.mubr.bf16.gmra.mxu0 %v148
      %v519 = vpop.f32.mrf.mxu0
      %v520 = vadd.f32 %v264, %v519
      %v521 = vpop.f32.mrf.mxu0
      %v522 = vpop.f32.mrf.mxu0
      %v523 = vpop.f32.mrf.mxu0
      %524 = vdwg.mxu0
      %525 = vmatprep.subr.bf16.mxu0 0
      %526 = vmatpush1.bf16.msra.mxu0 %v432
      %527 = vmatprep.subr.bf16.mxu0 0
      %528 = vmatpush1.bf16.msra.mxu0 %v431
      %529 = vmatprep.subr.bf16.mxu0 0
      %530 = vmatpush1.bf16.msra.mxu0 %v430
      %531 = vmatprep.subr.bf16.mxu0 0
      %532 = vmatpush1.bf16.msra.mxu0 %v429
      %533 = vmatprep.subr.bf16.mxu0 0
      %534 = vmatpush1.bf16.msra.mxu0 %v428
      %535 = vmatprep.subr.bf16.mxu0 0
      %536 = vmatpush1.bf16.msra.mxu0 %v427
      %537 = vmatprep.subr.bf16.mxu0 0
      %538 = vmatpush1.bf16.msra.mxu0 %v426
      %539 = vmatprep.subr.bf16.mxu0 0
      %540 = vmatpush1.bf16.msra.mxu0 %v425
      %541 = vmatprep.subr.bf16.mxu0 0
      %542 = vmatpush2.bf16.msra.mxu0 %v440
      %543 = vmatprep.subr.bf16.mxu0 0
      %544 = vmatpush2.bf16.msra.mxu0 %v439
      %545 = vmatprep.subr.bf16.mxu0 0
      %546 = vmatpush2.bf16.msra.mxu0 %v438
      %547 = vmatprep.subr.bf16.mxu0 0
      %548 = vmatpush2.bf16.msra.mxu0 %v437
      %549 = vmatprep.subr.bf16.mxu0 0
      %550 = vmatpush2.bf16.msra.mxu0 %v436
      %551 = vmatprep.subr.bf16.mxu0 0
      %552 = vmatpush2.bf16.msra.mxu0 %v435
      %553 = vmatprep.subr.bf16.mxu0 0
      %554 = vmatpush2.bf16.msra.mxu0 %v434
      %555 = vmatprep.subr.bf16.mxu0 0
      %556 = vmatpush2.bf16.msra.mxu0 %v433
      %557 = vmatprep.mubr.bf16.mxu0 %v151
      %558 = vmatmul.mubr.bf16.gmra.mxu0 %v150
      %v559 = vpop.f32.mrf.mxu0
      %v560 = vadd.f32 %v520, %v559
      %v561 = vpop.f32.mrf.mxu0
      %v562 = vpop.f32.mrf.mxu0
      %v563 = vpop.f32.mrf.mxu0
      %564 = vdwg.mxu0
      %565 = vmatprep.subr.bf16.mxu0 0
      %566 = vmatpush1.bf16.msra.mxu0 0
      %567 = vmatprep.subr.bf16.mxu0 0
      %568 = vmatpush1.bf16.msra.mxu0 0
      %569 = vmatprep.subr.bf16.mxu0 0
      %570 = vmatpush1.bf16.msra.mxu0 0
      %571 = vmatprep.subr.bf16.mxu0 0
      %572 = vmatpush1.bf16.msra.mxu0 0
      %573 = vmatprep.subr.bf16.mxu0 0
      %574 = vmatpush1.bf16.msra.mxu0 %v444
      %575 = vmatprep.subr.bf16.mxu0 0
      %576 = vmatpush1.bf16.msra.mxu0 %v443
      %577 = vmatprep.subr.bf16.mxu0 0
      %578 = vmatpush1.bf16.msra.mxu0 %v442
      %579 = vmatprep.subr.bf16.mxu0 0
      %580 = vmatpush1.bf16.msra.mxu0 %v441
      %581 = vmatprep.subr.bf16.mxu0 0
      %582 = vmatpush2.bf16.msra.mxu0 0
      %583 = vmatprep.subr.bf16.mxu0 0
      %584 = vmatpush2.bf16.msra.mxu0 0
      %585 = vmatprep.subr.bf16.mxu0 0
      %586 = vmatpush2.bf16.msra.mxu0 0
      %587 = vmatprep.subr.bf16.mxu0 0
      %588 = vmatpush2.bf16.msra.mxu0 0
      %589 = vmatprep.subr.bf16.mxu0 0
      %590 = vmatpush2.bf16.msra.mxu0 0
      %591 = vmatprep.subr.bf16.mxu0 0
      %592 = vmatpush2.bf16.msra.mxu0 0
      %593 = vmatprep.subr.bf16.mxu0 0
      %594 = vmatpush2.bf16.msra.mxu0 0
      %595 = vmatprep.subr.bf16.mxu0 0
      %596 = vmatpush2.bf16.msra.mxu0 0
      %597 = vmatprep.mubr.bf16.mxu0 0
      %598 = vmatmul.mubr.bf16.gmra.mxu0 %v483
      %v599 = vpop.f32.mrf.mxu0
      %v600 = vadd.f32 %v560, %v599
      %v601 = vpop.f32.mrf.mxu0
      %v602 = vpop.f32.mrf.mxu0
      %v603 = vpop.f32.mrf.mxu0
      %604 = vdwg.mxu0
      %v605 = vxor.u32 %v600, 2147483648
      %v606 = vmul.f32 %v605, 1.442695
      %v607 = vpow.pop %v606
      %v608 = vadd.f32 %v607, 1.0
      %v609 = vrcp.pop %v608
      %v610 = vmul.f32 1.0, %v609
      %v611 = vpack.c.bf16 %v610, %v610
      %v612 = vlaneseq
      %v613 = vshrl.u32 %v612, 7
      %v614 = vsub.s32 1, %v613
      %v615 = vrot.slane %v258, %v614
      %v632 = vunpack.c.l.b16 %v225
      %v633 = vunpack.c.l.b16 %v226
      %v634 = vunpack.c.l.b16 %v227
      %v635 = vunpack.c.l.b16 %v228
      %v636 = vunpack.c.l.b16 %v229
      %v637 = vunpack.c.l.b16 %v230
      %v638 = vunpack.c.l.b16 %v231
      %v639 = vunpack.c.l.b16 %v232
      %v640 = vunpack.c.l.b16 %v233
      %v641 = vunpack.c.l.b16 %v234
      %v642 = vunpack.c.l.b16 %v235
      %v643 = vunpack.c.l.b16 %v236
      %v644 = vunpack.c.l.b16 %v237
      %v645 = vunpack.c.l.b16 %v238
      %v646 = vunpack.c.l.b16 %v239
      %v647 = vunpack.c.l.b16 %v240
      %v648 = vpack.c.b16 %v633, %v632
      %v649 = vpack.c.b16 %v635, %v634
      %v650 = vpack.c.b16 %v637, %v636
      %v651 = vpack.c.b16 %v639, %v638
      %v652 = vpack.c.b16 %v641, %v640
      %v653 = vpack.c.b16 %v643, %v642
      %v654 = vpack.c.b16 %v645, %v644
      %v655 = vpack.c.b16 %v647, %v646
      %664 = vmatprep.subr.bf16.mxu0 0
      %665 = vmatpush1.bf16.msra.mxu0 %v655
      %666 = vmatprep.subr.bf16.mxu0 0
      %667 = vmatpush1.bf16.msra.mxu0 %v654
      %668 = vmatprep.subr.bf16.mxu0 0
      %669 = vmatpush1.bf16.msra.mxu0 %v653
      %670 = vmatprep.subr.bf16.mxu0 0
      %671 = vmatpush1.bf16.msra.mxu0 %v652
      %672 = vmatprep.subr.bf16.mxu0 0
      %673 = vmatpush1.bf16.msra.mxu0 %v651
      %674 = vmatprep.subr.bf16.mxu0 0
      %675 = vmatpush1.bf16.msra.mxu0 %v650
      %676 = vmatprep.subr.bf16.mxu0 0
      %677 = vmatpush1.bf16.msra.mxu0 %v649
      %678 = vmatprep.subr.bf16.mxu0 0
      %679 = vmatpush1.bf16.msra.mxu0 %v648
      %680 = vmatprep.subr.bf16.mxu0 0
      %681 = vmatpush2.bf16.msra.mxu0 0
      %682 = vmatprep.subr.bf16.mxu0 0
      %683 = vmatpush2.bf16.msra.mxu0 0
      %684 = vmatprep.subr.bf16.mxu0 0
      %685 = vmatpush2.bf16.msra.mxu0 0
      %686 = vmatprep.subr.bf16.mxu0 0
      %687 = vmatpush2.bf16.msra.mxu0 0
      %688 = vmatprep.subr.bf16.mxu0 0
      %689 = vmatpush2.bf16.msra.mxu0 0
      %690 = vmatprep.subr.bf16.mxu0 0
      %691 = vmatpush2.bf16.msra.mxu0 0
      %692 = vmatprep.subr.bf16.mxu0 0
      %693 = vmatpush2.bf16.msra.mxu0 0
      %694 = vmatprep.subr.bf16.mxu0 0
      %695 = vmatpush2.bf16.msra.mxu0 0
      %696 = vmatprep.mubr.bf16.mxu0 0
      %697 = vmatmul.mubr.bf16.gmra.mxu0 %v611
      %v698 = vpop.f32.mrf.mxu0
      %v699 = vadd.f32 %v615, %v698
      %v700 = vpop.f32.mrf.mxu0
      %v701 = vpop.f32.mrf.mxu0
      %v702 = vpop.f32.mrf.mxu0
      %703 = vdwg.mxu0
      %v704 = vxor.u32 %v699, 2147483648
      %v705 = vmul.f32 %v704, 1.442695
      %v706 = vpow.pop %v705
      %v707 = vadd.f32 %v706, 1.0
      %v708 = vrcp.pop %v707
      %v709 = vmul.f32 1.0, %v708
      %v710 = vpack.c.bf16 %v709, %v709
      %v711 = vlaneseq
      %v712 = vshrl.u32 %v711, 7
      %v713 = vsub.s32 2, %v712
      %v714 = vrot.slane %v260, %v713
      %v731 = vunpack.c.l.b16 %v241
      %v732 = vunpack.c.l.b16 %v242
      %v733 = vunpack.c.l.b16 %v243
      %v734 = vunpack.c.l.b16 %v244
      %v735 = vunpack.c.l.b16 %v245
      %v736 = vunpack.c.l.b16 %v246
      %v737 = vunpack.c.l.b16 %v247
      %v738 = vunpack.c.l.b16 %v248
      %v739 = vunpack.c.l.b16 %v249
      %v740 = vunpack.c.l.b16 %v250
      %v741 = vunpack.c.l.b16 %v251
      %v742 = vunpack.c.l.b16 %v252
      %v743 = vunpack.c.l.b16 %v253
      %v744 = vunpack.c.l.b16 %v254
      %v745 = vunpack.c.l.b16 %v255
      %v746 = vunpack.c.l.b16 %v256
      %v747 = vpack.c.b16 %v732, %v731
      %v748 = vpack.c.b16 %v734, %v733
      %v749 = vpack.c.b16 %v736, %v735
      %v750 = vpack.c.b16 %v738, %v737
      %v751 = vpack.c.b16 %v740, %v739
      %v752 = vpack.c.b16 %v742, %v741
      %v753 = vpack.c.b16 %v744, %v743
      %v754 = vpack.c.b16 %v746, %v745
      %763 = vmatprep.subr.bf16.mxu0 0
      %764 = vmatpush1.bf16.msra.mxu0 %v754
      %765 = vmatprep.subr.bf16.mxu0 0
      %766 = vmatpush1.bf16.msra.mxu0 %v753
      %767 = vmatprep.subr.bf16.mxu0 0
      %768 = vmatpush1.bf16.msra.mxu0 %v752
      %769 = vmatprep.subr.bf16.mxu0 0
      %770 = vmatpush1.bf16.msra.mxu0 %v751
      %771 = vmatprep.subr.bf16.mxu0 0
      %772 = vmatpush1.bf16.msra.mxu0 %v750
      %773 = vmatprep.subr.bf16.mxu0 0
      %774 = vmatpush1.bf16.msra.mxu0 %v749
      %775 = vmatprep.subr.bf16.mxu0 0
      %776 = vmatpush1.bf16.msra.mxu0 %v748
      %777 = vmatprep.subr.bf16.mxu0 0
      %778 = vmatpush1.bf16.msra.mxu0 %v747
      %779 = vmatprep.subr.bf16.mxu0 0
      %780 = vmatpush2.bf16.msra.mxu0 0
      %781 = vmatprep.subr.bf16.mxu0 0
      %782 = vmatpush2.bf16.msra.mxu0 0
      %783 = vmatprep.subr.bf16.mxu0 0
      %784 = vmatpush2.bf16.msra.mxu0 0
      %785 = vmatprep.subr.bf16.mxu0 0
      %786 = vmatpush2.bf16.msra.mxu0 0
      %787 = vmatprep.subr.bf16.mxu0 0
      %788 = vmatpush2.bf16.msra.mxu0 0
      %789 = vmatprep.subr.bf16.mxu0 0
      %790 = vmatpush2.bf16.msra.mxu0 0
      %791 = vmatprep.subr.bf16.mxu0 0
      %792 = vmatpush2.bf16.msra.mxu0 0
      %793 = vmatprep.subr.bf16.mxu0 0
      %794 = vmatpush2.bf16.msra.mxu0 0
      %795 = vmatprep.mubr.bf16.mxu0 0
      %796 = vmatmul.mubr.bf16.gmra.mxu0 %v710
      %v797 = vpop.f32.mrf.mxu0
      %v798 = vadd.f32 %v714, %v797
      %v799 = vpop.f32.mrf.mxu0
      %v800 = vpop.f32.mrf.mxu0
      %v801 = vpop.f32.mrf.mxu0
      %802 = vdwg.mxu0
      %v803 = vxor.u32 %v798, 2147483648
      %v804 = vmul.f32 %v803, 1.442695
      %v805 = vpow.pop %v804
      %v806 = vadd.f32 %v805, 1.0
      %v807 = vrcp.pop %v806
      %v808 = vmul.f32 1.0, %v807
      %v809 = vpack.c.bf16 %v808, %v808
      %810 = vst [vmem:[%s141] sm:$0xf] %v809
      %p811 = scmp.lt.s32.totalorder %s13, 1
      %s812 = scalar_select %p811, %s13, 1
      %s813 = smul.addr %s812, 4
      %s814 = scalar_lea.vmem %s2, %s813
      // Predicated region
      $region29: #{blink_forward.1} parent=27 // pred_check
        %p815 = pneg %p78
      $region30: #{blink_forward.1} parent=27 // pred_check_branch
        %817 = sbr.rel (%p815) target = $region32
      $region31: #{blink_forward.1} parent=27 // pred_region
        _
      $region32: #{blink_forward.1} parent=27 // pred_fallthru
        _
    $region28: #{blink_forward.1} parent=5 // pred_fallthru
      _
    %p818 = scmp.le.s32.totalorder 2, %s8
    // Predicated region
    $region33: #{blink_forward.1} parent=5 // pred_check
      %p819 = pneg %p818
    $region34: #{blink_forward.1} parent=5 // pred_check_branch
      %821 = sbr.rel (%p819) target = $region36
    $region35: #{blink_forward.1} parent=5 // pred_region
      %s822 = ssub.s32 %s8, 2
      // Predicated region
      $region37: #{blink_forward.1} parent=35 // pred_check
        %p823 = pneg %p84
      $region38: #{blink_forward.1} parent=35 // pred_check_branch
        %825 = sbr.rel (%p823) target = $region40
      $region39: #{blink_forward.1} parent=35 // pred_region
        %p826 = scmp.lt.s32.totalorder %s14, 1
        %s827 = scalar_select %p826, %s14, 1
        %s828 = smul.addr %s827, 4
        %s829 = scalar_lea.vmem %s2, %s828
      $region40: #{blink_forward.1} parent=35 // pred_fallthru
        _
    $region36: #{blink_forward.1} parent=5 // pred_fallthru
      _
  $region6: #{blink_forward.1} parent=0 // loop_footer
    %s12 = sadd.s32 1, %s8
  $region7: #{blink_forward.1} parent=0 // loop_footer_branch
    %7 = sbr.rel target = $region3
  $region8: #{blink_forward.1} parent=0 // loop_exit
    _

</llo_original>
